<compile_context>
chip_gen: v7x
topology: tpu7x:2x2x1
jax: 0.10.0
libtpu: 0.0.40
codegen_flags: <defaults>
</compile_context>

<pallas_src>
import math

import jax
import jax.numpy as jnp
from jax.experimental import pallas as pl
from jax.experimental.pallas import tpu as pltpu


# ---------------------------------------------------------------------------
# Kernels
# ---------------------------------------------------------------------------
def _scale_bias_kernel(x_ref, w_ref, b_ref, o_ref):
    # x_ref: (tm, tn); w_ref / b_ref: (1, tn) -> broadcast over sublanes (free).
    x = x_ref[...].astype(jnp.float32)
    w = w_ref[...].astype(jnp.float32)
    b = b_ref[...].astype(jnp.float32)
    o_ref[...] = (x * w + b).astype(o_ref.dtype)


def _scale_kernel(x_ref, w_ref, o_ref):
    x = x_ref[...].astype(jnp.float32)
    w = w_ref[...].astype(jnp.float32)
    o_ref[...] = (x * w).astype(o_ref.dtype)


# ---------------------------------------------------------------------------
# Tiling helpers
# ---------------------------------------------------------------------------
def _round_up(v, g):
    return ((v + g - 1) // g) * g


def _round_down(v, g):
    return (v // g) * g


def _sublane_granule(dtype):
    # f32 -> 8, bf16/f16 -> 16, int8/fp8 -> 32 (sub-32-bit dtypes pack sublanes).
    itemsize = jnp.dtype(dtype).itemsize
    return max(8, 32 // max(itemsize, 1))


# ---------------------------------------------------------------------------
# Wrapper
# ---------------------------------------------------------------------------
def elementwise_multiplication(x, weight, bias=None, *,
                               block_budget_bytes=2 * 1024 * 1024,
                               min_pallas_bytes=256 * 1024,
                               force_pallas=False):
    """out = x * weight (+ bias), broadcasting over the last dim of x."""
    orig_shape = x.shape
    N = weight.shape[0]
    assert orig_shape[-1] == N, "last dim of x must equal num_features"
    M = math.prod(orig_shape[:-1]) if len(orig_shape) > 1 else 1

    param_dtypes = [weight.dtype] + ([bias.dtype] if bias is not None else [])
    out_dtype = jnp.result_type(x.dtype, *param_dtypes)
    itemsize = jnp.dtype(x.dtype).itemsize

    # Tiny tensors: pallas_call launch/pipeline overhead dominates; let XLA fuse.
    if not force_pallas and M * N * itemsize < min_pallas_bytes:
        out = x.astype(jnp.float32) * weight.astype(jnp.float32)
        if bias is not None:
            out = out + bias.astype(jnp.float32)
        return out.astype(out_dtype)

    x2 = x.reshape(M, N)
    w2 = weight.reshape(1, N)
    b2 = bias.reshape(1, N) if bias is not None else None

    sub = _sublane_granule(x.dtype)

    # ---- lane (column) tile: prefer full width -> contiguous HBM DMAs --------
    if N <= 128 or N * itemsize * sub <= block_budget_bytes:
        tn = N                                   # full extent (exempt from 128 rule)
    else:
        tn = _round_down(min(N, 4096), 128)      # aligned cap; ragged tail is masked
        tn = tn if tn > 0 else N

    # ---- sublane (row) tile: as many rows as fit the block budget ------------
    rows_fit = max(sub, _round_down(block_budget_bytes // (tn * itemsize), sub))
    if M <= sub:
        tm = M                                   # full extent, single block
    else:
        tm = min(rows_fit, _round_up(M, sub))
        # v7x megacore: guarantee >= 2 parallel steps over rows when possible.
        if pl.cdiv(M, tm) < 2:
            tm = max(sub, _round_up(pl.cdiv(M, 2), sub))

    gm = pl.cdiv(M, tm)
    gn = pl.cdiv(N, tn)

    if gn == 1:
        # 1-D grid over rows; params fetched once (constant block index).
        grid = (gm,)
        x_spec = pl.BlockSpec((tm, tn), lambda i: (i, 0))
        p_spec = pl.BlockSpec((1, tn), lambda i: (0, 0))
        dims = ("parallel",)
    else:
        # Column tiles outermost so (0, j) is constant across the inner row loop
        # and the params are not re-DMA'd every step.
        grid = (gn, gm)
        x_spec = pl.BlockSpec((tm, tn), lambda j, i: (i, j))
        p_spec = pl.BlockSpec((1, tn), lambda j, i: (0, j))
        dims = ("parallel", "parallel")
    o_spec = x_spec

    flops = (2 if bias is not None else 1) * M * N
    bytes_accessed = (
        M * N * (itemsize + jnp.dtype(out_dtype).itemsize)
        + N * jnp.dtype(weight.dtype).itemsize
        + (N * jnp.dtype(bias.dtype).itemsize if bias is not None else 0))
    cost = pl.CostEstimate(flops=flops, transcendentals=0,
                           bytes_accessed=bytes_accessed)

    common = dict(
        out_shape=jax.ShapeDtypeStruct((M, N), out_dtype),
        grid=grid,
        out_specs=o_spec,
        compiler_params=pltpu.CompilerParams(dimension_semantics=dims),
        cost_estimate=cost,
    )

    if bias is not None:
        out = pl.pallas_call(_scale_bias_kernel,
                             in_specs=[x_spec, p_spec, p_spec],
                             **common)(x2, w2, b2)
    else:
        out = pl.pallas_call(_scale_kernel,
                             in_specs=[x_spec, p_spec],
                             **common)(x2, w2)

    return out.reshape(orig_shape)


def init_params(key, num_features, with_bias=True):
    """Matches ElementwiseMultiplication.reset_parameters():
       weight ~ Normal(0, sqrt(5)); bias ~ Uniform(-sqrt(5), sqrt(5))."""
    k_w, k_b = jax.random.split(key)
    weight = jax.random.normal(k_w, (num_features,), jnp.float32) * math.sqrt(5)
    bias = (jax.random.uniform(k_b, (num_features,), jnp.float32,
                               -math.sqrt(5), math.sqrt(5))
            if with_bias else None)
    return weight, bias


if __name__ == "__main__":
    # Small shapes consistent with the module: weight broadcasts over the last
    # dim, so x = (batch, channels, spatial, num_features).
    num_features = 256
    x_shape = (2, 4, 16, num_features)

    key = jax.random.PRNGKey(0)
    k_param, k_x = jax.random.split(key)
    weight, bias = init_params(k_param, num_features, with_bias=True)
    x = jax.random.normal(k_x, x_shape, jnp.float32)

    # --- bias=True path through the Pallas kernel --------------------------
    fn = jax.jit(lambda xx, ww, bb: elementwise_multiplication(
        xx, ww, bb, force_pallas=True))
    out = jax.block_until_ready(fn(x, weight, bias))
    ref = x * weight + bias
    assert out.shape == x_shape
    assert jnp.allclose(out, ref, atol=1e-6, rtol=1e-6), "bias path mismatch"

    # --- bias=None path (register_parameter('bias', None)) -----------------
    fn_nb = jax.jit(lambda xx, ww: elementwise_multiplication(
        xx, ww, None, force_pallas=True))
    out_nb = jax.block_until_ready(fn_nb(x, weight))
    assert jnp.allclose(out_nb, x * weight, atol=1e-6, rtol=1e-6), \
        "no-bias path mismatch"

    # --- bf16 input, f32 params (promotion handled in f32, cast on store) ---
    x_bf16 = x.astype(jnp.bfloat16)
    fn_bf = jax.jit(lambda xx, ww, bb: elementwise_multiplication(
        xx, ww, bb, force_pallas=True))
    out_bf = jax.block_until_ready(fn_bf(x_bf16, weight, bias))
    ref_bf = x_bf16.astype(jnp.float32) * weight + bias
    assert out_bf.dtype == jnp.float32
    assert jnp.allclose(out_bf, ref_bf, atol=1e-6, rtol=1e-6), \
        "bf16 path mismatch"

    # --- tiny-input shortcut path (plain jnp, no pallas_call) ---------------
    fn_small = jax.jit(elementwise_multiplication)
    out_small = jax.block_until_ready(fn_small(x, weight, bias))
    assert jnp.allclose(out_small, ref, atol=1e-6, rtol=1e-6), \
        "shortcut path mismatch"

    print("KERNEL_OK")
</pallas_src>

<mosaic_0001>
module attributes {stable_mosaic.version = 11 : i64} {
  func.func @_scale_bias_kernel(%arg0: i32, %arg1: memref<64x256xf32, #tpu.memory_space<vmem>>, %arg2: memref<1x256xf32, #tpu.memory_space<vmem>>, %arg3: memref<1x256xf32, #tpu.memory_space<vmem>>, %arg4: memref<64x256xf32, #tpu.memory_space<vmem>>) attributes {dimension_semantics = [#tpu.dimension_semantics<parallel>], iteration_bounds = array<i64: 2>, scalar_prefetch = 0 : i64, scratch_operands = 0 : i64, tpu.core_type = #tpu.core_type<tc>, window_params = [{transform_indices = @transform_0, window_bounds = array<i64: 64, 256>}, {pipeline_mode = #tpu.pipeline_mode<synchronous>, transform_indices = @transform_1, window_bounds = array<i64: 1, 256>}, {pipeline_mode = #tpu.pipeline_mode<synchronous>, transform_indices = @transform_2, window_bounds = array<i64: 1, 256>}, {transform_indices = @transform_3, window_bounds = array<i64: 64, 256>}]} {
    %c0 = arith.constant 0 : index
    %c0_0 = arith.constant 0 : index
    %0 = vector.load %arg1[%c0, %c0_0] : memref<64x256xf32, #tpu.memory_space<vmem>>, vector<64x256xf32>
    %c0_1 = arith.constant 0 : index
    %c0_2 = arith.constant 0 : index
    %1 = vector.load %arg2[%c0_1, %c0_2] : memref<1x256xf32, #tpu.memory_space<vmem>>, vector<1x256xf32>
    %c0_3 = arith.constant 0 : index
    %c0_4 = arith.constant 0 : index
    %2 = vector.load %arg3[%c0_3, %c0_4] : memref<1x256xf32, #tpu.memory_space<vmem>>, vector<1x256xf32>
    %3 = vector.broadcast %1 : vector<1x256xf32> to vector<64x256xf32>
    %4 = arith.mulf %0, %3 : vector<64x256xf32>
    %5 = vector.broadcast %2 : vector<1x256xf32> to vector<64x256xf32>
    %6 = arith.addf %4, %5 : vector<64x256xf32>
    %c0_5 = arith.constant 0 : index
    %c0_6 = arith.constant 0 : index
    %7 = vector.load %arg4[%c0_5, %c0_6] : memref<64x256xf32, #tpu.memory_space<vmem>>, vector<64x256xf32>
    tpu.vector_store %arg4[%c0_5, %c0_6], %6 {strides = array<i32>} : memref<64x256xf32, #tpu.memory_space<vmem>>, vector<64x256xf32>,
    return
  }
  func.func @transform_0(%arg0: i32) -> (i32, i32) {
    %c0_i32 = arith.constant 0 : i32
    %c0_i32_0 = arith.constant 0 : i32
    return %arg0, %c0_i32 : i32, i32
  }
  func.func @transform_1(%arg0: i32) -> (i32, i32) {
    %c0_i32 = arith.constant 0 : i32
    %c0_i32_0 = arith.constant 0 : i32
    %c0_i32_1 = arith.constant 0 : i32
    return %c0_i32, %c0_i32_0 : i32, i32
  }
  func.func @transform_2(%arg0: i32) -> (i32, i32) {
    %c0_i32 = arith.constant 0 : i32
    %c0_i32_0 = arith.constant 0 : i32
    %c0_i32_1 = arith.constant 0 : i32
    return %c0_i32, %c0_i32_0 : i32, i32
  }
  func.func @transform_3(%arg0: i32) -> (i32, i32) {
    %c0_i32 = arith.constant 0 : i32
    %c0_i32_0 = arith.constant 0 : i32
    return %arg0, %c0_i32 : i32, i32
  }
}

</mosaic_0001>

<llo_original>
// kernel: _lambda_.1
$region0: #{_lambda_.1}
  #allocation0 [shape = 'u32[]', space=smem, size = 0x4, offset = 0x4, fixed_abs, tag = 'smem constant byte address 0x4 - core index']
  #allocation1 [shape = 'u32[144,128]{1,0:T(1,128)}', space=vmem, size = 0x12000, scoped, tag = 'internal scratch']
  %s0 = inlined_call_operand.hbm [shape: f32[128,256], index: 0, kind: input, shape index: {}]
  %s1 = inlined_call_operand.vmem [shape: f32[1,256], index: 1, kind: input, shape index: {}]
  %s2 = inlined_call_operand.vmem [shape: f32[1,256], index: 2, kind: input, shape index: {}]
  %s3 = inlined_call_operand.hbm [shape: f32[128,256], index: 3, kind: output, shape index: {}]
  %s4 = sld [smem:[#allocation0]]
  $region49: #{_lambda_.1} parent=0
    _
  %s6 = ssub.s32 1, %s4
  %s7 = scalar_select 0, %s6, %s4
  $region1: #{_lambda_.1} parent=0
    #allocation2 [shape = 'u8[131072]{0}', space=vmem, size = 0x20000, scoped, tag = 'input window, operand 0']
    #allocation3 [shape = 's32[2]{0}', space=sflag, size = 0x8, scoped, tag = 'scoped memory for _lambda_.1']
    #allocation4 [shape = 's32[2]{0}', space=sflag, size = 0x8, scoped, tag = 'scoped memory for _lambda_.1']
    #allocation5 [shape = 'u8[131072]{0}', space=vmem, size = 0x20000, scoped, tag = 'output window, operand 0']
    %8 = vsyncpa [#allocation3], 0
    %s9 = scalar_lea.sflag [#allocation3], 1
    %10 = vsyncpa %s9, 0
    %11 = vsyncpa [#allocation4], 0
    %s12 = scalar_lea.sflag [#allocation4], 1
    %13 = vsyncpa %s12, 0
    loop: start=0, step=1, limit=4
    $region2: #{_lambda_.1} parent=1 // loop_pre_header
      _
    $region3: #{_lambda_.1} parent=1 // loop_header
      %s15 = sphi 0, %s19
      %p16 = scmp.ge.s32.totalorder %s15, 4
      %s25 = sphi 0, %s27
      %s28 = sphi 0, %s25
      %s29 = sphi 0, %s28
      %s45 = sphi 0, %s29
      %s49 = sphi 0, %s49
      %s51 = sphi 0, %s49
      %s52 = sphi 0, %s51
      %s66 = sphi 0, %s52
      %s70 = sphi 0, %s70
      %s72 = sphi 0, %s70
      %s73 = sphi 0, %s72
      %s87 = sphi 0, %s73
      %s93 = sphi 0, %s95
      %s96 = sphi 0, %s93
      %s97 = sphi 0, %s96
      %s113 = sphi 0, %s97
    $region4: #{_lambda_.1} parent=1 // loop_header_branch
      %18 = sbr.rel (%p16) target = $region8
    $region5: #{_lambda_.1} parent=1 // loop_body
      %s20 = ssub.s32 %s15, 1
      %s21 = ssub.s32 %s15, 2
      %s22 = sadd.s32 %s15, 1
      %s23 = ssub.s32 %s15, %s22
      %p24 = scmp.eq.s32.totalorder %s23, 0
      %s26 = sadd.s32 %s25, 1
      %s27 = scalar_select %p24, %s25, %s26
      %p30 = pneg %p24
      %p31 = scmp.eq.s32.totalorder %s15, 1
      %p32 = por %p30, %p31
      %p33 = scmp.ne.s32.totalorder %s25, %s28
      %p34 = scmp.eq.s32.totalorder %s15, 0
      %p35 = por %p33, %p34
      %p36 = scmp.ne.s32.totalorder %s25, %s28
      %p37 = scmp.eq.s32.totalorder %s20, 1
      %p38 = por %p36, %p37
      %p39 = scmp.ne.s32.totalorder %s28, %s29
      %p40 = scmp.eq.s32.totalorder %s20, 0
      %p41 = por %p39, %p40
      %p42 = scmp.ne.s32.totalorder %s28, %s29
      %p43 = scmp.eq.s32.totalorder %s21, 1
      %p44 = por %p42, %p43
      %p46 = scmp.ne.s32.totalorder %s29, %s45
      %p47 = scmp.eq.s32.totalorder %s21, 0
      %p48 = por %p46, %p47
      %s50 = sadd.s32 %s49, 1
      %p53 = scmp.eq.s32.totalorder %s15, 1
      %p54 = scmp.ne.s32.totalorder %s49, %s51
      %p55 = scmp.eq.s32.totalorder %s15, 0
      %p56 = por %p54, %p55
      %p57 = scmp.ne.s32.totalorder %s49, %s51
      %p58 = scmp.eq.s32.totalorder %s20, 1
      %p59 = por %p57, %p58
      %p60 = scmp.ne.s32.totalorder %s51, %s52
      %p61 = scmp.eq.s32.totalorder %s20, 0
      %p62 = por %p60, %p61
      %p63 = scmp.ne.s32.totalorder %s51, %s52
      %p64 = scmp.eq.s32.totalorder %s21, 1
      %p65 = por %p63, %p64
      %p67 = scmp.ne.s32.totalorder %s52, %s66
      %p68 = scmp.eq.s32.totalorder %s21, 0
      %p69 = por %p67, %p68
      %s71 = sadd.s32 %s70, 1
      %p74 = scmp.eq.s32.totalorder %s15, 1
      %p75 = scmp.ne.s32.totalorder %s70, %s72
      %p76 = scmp.eq.s32.totalorder %s15, 0
      %p77 = por %p75, %p76
      %p78 = scmp.ne.s32.totalorder %s70, %s72
      %p79 = scmp.eq.s32.totalorder %s20, 1
      %p80 = por %p78, %p79
      %p81 = scmp.ne.s32.totalorder %s72, %s73
      %p82 = scmp.eq.s32.totalorder %s20, 0
      %p83 = por %p81, %p82
      %p84 = scmp.ne.s32.totalorder %s72, %s73
      %p85 = scmp.eq.s32.totalorder %s21, 1
      %p86 = por %p84, %p85
      %p88 = scmp.ne.s32.totalorder %s73, %s87
      %p89 = scmp.eq.s32.totalorder %s21, 0
      %p90 = por %p88, %p89
      %s91 = ssub.s32 %s15, %s22
      %p92 = scmp.eq.s32.totalorder %s91, 0
      %s94 = sadd.s32 %s93, 1
      %s95 = scalar_select %p92, %s93, %s94
      %p98 = pneg %p92
      %p99 = scmp.eq.s32.totalorder %s15, 1
      %p100 = por %p98, %p99
      %p101 = scmp.ne.s32.totalorder %s93, %s96
      %p102 = scmp.eq.s32.totalorder %s15, 0
      %p103 = por %p101, %p102
      %p104 = scmp.ne.s32.totalorder %s93, %s96
      %p105 = scmp.eq.s32.totalorder %s20, 1
      %p106 = por %p104, %p105
      %p107 = scmp.ne.s32.totalorder %s96, %s97
      %p108 = scmp.eq.s32.totalorder %s20, 0
      %p109 = por %p107, %p108
      %p110 = scmp.ne.s32.totalorder %s96, %s97
      %p111 = scmp.eq.s32.totalorder %s21, 1
      %p112 = por %p110, %p111
      %p114 = scmp.ne.s32.totalorder %s97, %s113
      %p115 = scmp.eq.s32.totalorder %s21, 0
      %p116 = por %p114, %p115
      %p117 = scmp.le.s32.totalorder 1, %s15
      %p118 = scmp.lt.s32.totalorder %s15, 3
      %p119 = pnand %p117, %p118
      %p120 = pneg %p119
      // Predicated region
      $region9: #{_lambda_.1} parent=5 // pred_check
        _
      $region10: #{_lambda_.1} parent=5 // pred_check_branch
        %122 = sbr.rel (%p119) target = $region12
      $region11: #{_lambda_.1} parent=5 // pred_region
        %s123 = ssub.s32 %s15, 1
        // Predicated region
        $region13: #{_lambda_.1} parent=11 // pred_check
          %p124 = pneg %p62
        $region14: #{_lambda_.1} parent=11 // pred_check_branch
          %126 = sbr.rel (%p124) target = $region16
        $region15: #{_lambda_.1} parent=11 // pred_region
          _
        $region16: #{_lambda_.1} parent=11 // pred_fallthru
          _
        // Predicated region
        $region17: #{_lambda_.1} parent=11 // pred_check
          %p127 = pneg %p83
        $region18: #{_lambda_.1} parent=11 // pred_check_branch
          %129 = sbr.rel (%p127) target = $region20
        $region19: #{_lambda_.1} parent=11 // pred_region
          _
        $region20: #{_lambda_.1} parent=11 // pred_fallthru
          _
      $region12: #{_lambda_.1} parent=5 // pred_fallthru
        _
      %p130 = scmp.lt.s32.totalorder %s15, 2
      // Predicated region
      $region21: #{_lambda_.1} parent=5 // pred_check
        %p131 = pneg %p130
      $region22: #{_lambda_.1} parent=5 // pred_check_branch
        %133 = sbr.rel (%p131) target = $region24
      $region23: #{_lambda_.1} parent=5 // pred_region
        // Predicated region
        $region25: #{_lambda_.1} parent=23 // pred_check
          %p134 = pneg %p35
        $region26: #{_lambda_.1} parent=23 // pred_check_branch
          %136 = sbr.rel (%p134) target = $region28
        $region27: #{_lambda_.1} parent=23 // pred_region
          %s137 = sand.u32 %s25, 1
          %s138 = scalar_lea.sflag [#allocation3], %s137
          %s139 = sand.u32 %s25, 1
          %s140 = smul.addr %s139, 128
          %s141 = scalar_lea.vmem [#allocation2], %s140
          %s142 = smul.u32 8, %s15
          %s144 = ssub.s32 2048, 2048
          %145 = vsyncadd %s138, %s144
          %s146 = smul.addr %s142, 2
          %s147 = smul.addr %s146, 128
          %s148 = scalar_lea.hbm %s0, %s147
          %s149 = sshll.u32 %s141, 4
          %s150 = int_to_ptr.vmem [resolvable:$true] %s149
          %155 = dma.hbm_to_vmem [thread:$0]  %s148, 2048, %s150, %s138, 256, 256, 16
        $region28: #{_lambda_.1} parent=23 // pred_fallthru
          _
      $region24: #{_lambda_.1} parent=5 // pred_fallthru
        _
      %p156 = scmp.le.s32.totalorder 1, %s15
      %p157 = scmp.lt.s32.totalorder %s15, 3
      %p158 = pnand %p156, %p157
      %p159 = pneg %p158
      // Predicated region
      $region29: #{_lambda_.1} parent=5 // pred_check
        _
      $region30: #{_lambda_.1} parent=5 // pred_check_branch
        %161 = sbr.rel (%p158) target = $region32
      $region31: #{_lambda_.1} parent=5 // pred_region
        %s162 = ssub.s32 %s15, 1
        %s163 = sand.u32 %s28, 1
        %s164 = scalar_lea.sflag [#allocation3], %s163
        %s165 = sand.u32 %s28, 1
        %s166 = smul.addr %s165, 128
        %s167 = scalar_lea.vmem [#allocation2], %s166
        // Predicated region
        $region33: #{_lambda_.1} parent=31 // pred_check
          %p168 = pneg %p41
        $region34: #{_lambda_.1} parent=31 // pred_check_branch
          %170 = sbr.rel (%p168) target = $region36
        $region35: #{_lambda_.1} parent=31 // pred_region
          %171 = dma.done %s164, 2048
        $region36: #{_lambda_.1} parent=31 // pred_fallthru
          _
        %s172 = sand.u32 %s28, 1
        %s173 = scalar_lea.sflag [#allocation3], %s172
        %s174 = sand.u32 %s28, 1
        %s175 = smul.addr %s174, 128
        %s176 = scalar_lea.vmem [#allocation2], %s175
        %p177 = pneg %p41
        %p178 = pneg %p38
        %p179 = pneg %p62
        %p180 = pneg %p59
        %p181 = pneg %p83
        %p182 = pneg %p80
        %p183 = pneg %p109
        %p184 = pneg %p106
        %s185 = sand.u32 %s96, 1
        %s186 = scalar_lea.sflag [#allocation4], %s185
        %s187 = sand.u32 %s96, 1
        %s188 = smul.addr %s187, 128
        %s189 = scalar_lea.vmem [#allocation5], %s188
        %s190 = smul.u32 8, %s20
        %s191 = smul.u32 8, %s20
        %v192 = vld [vmem:[%s167] sm:$0xff]
        %v193 = vld [vmem:[%s167 + $0x8] sm:$0xff]
        %v194 = vld [vmem:[%s167 + $0x10] sm:$0xff]
        %v195 = vld [vmem:[%s167 + $0x18] sm:$0xff]
        %v196 = vld [vmem:[%s167 + $0x20] sm:$0xff]
        %v197 = vld [vmem:[%s167 + $0x28] sm:$0xff]
        %v198 = vld [vmem:[%s167 + $0x30] sm:$0xff]
        %v199 = vld [vmem:[%s167 + $0x38] sm:$0xff]
        %v200 = vld [vmem:[%s167 + $0x40] sm:$0xff]
        %v201 = vld [vmem:[%s167 + $0x48] sm:$0xff]
        %v202 = vld [vmem:[%s167 + $0x50] sm:$0xff]
        %v203 = vld [vmem:[%s167 + $0x58] sm:$0xff]
        %v204 = vld [vmem:[%s167 + $0x60] sm:$0xff]
        %v205 = vld [vmem:[%s167 + $0x68] sm:$0xff]
        %v206 = vld [vmem:[%s167 + $0x70] sm:$0xff]
        %v207 = vld [vmem:[%s167 + $0x78] sm:$0xff]
        %v208 = vld [vmem:[%s1] sm:$0x3]
        %v209 = vld [vmem:[%s2] sm:$0x3]
        %v211 = vlaneseq
        %v212 = vshrl.u32 %v211, 7
        %v213 = vsub.s32 0, %v212
        %v214 = vrot.slane %v208, %v213
        %v215 = vlaneseq
        %v216 = vshrl.u32 %v215, 7
        %v217 = vsub.s32 1, %v216
        %v218 = vrot.slane %v208, %v217
        %v221 = vmul.f32 %v192, %v214
        %v222 = vmul.f32 %v193, %v218
        %v223 = vmul.f32 %v194, %v214
        %v224 = vmul.f32 %v195, %v218
        %v225 = vmul.f32 %v196, %v214
        %v226 = vmul.f32 %v197, %v218
        %v227 = vmul.f32 %v198, %v214
        %v228 = vmul.f32 %v199, %v218
        %v229 = vmul.f32 %v200, %v214
        %v230 = vmul.f32 %v201, %v218
        %v231 = vmul.f32 %v202, %v214
        %v232 = vmul.f32 %v203, %v218
        %v233 = vmul.f32 %v204, %v214
        %v234 = vmul.f32 %v205, %v218
        %v235 = vmul.f32 %v206, %v214
        %v236 = vmul.f32 %v207, %v218
        %v238 = vlaneseq
        %v239 = vshrl.u32 %v238, 7
        %v240 = vsub.s32 0, %v239
        %v241 = vrot.slane %v209, %v240
        %v242 = vlaneseq
        %v243 = vshrl.u32 %v242, 7
        %v244 = vsub.s32 1, %v243
        %v245 = vrot.slane %v209, %v244
        %v248 = vadd.f32 %v221, %v241
        %v249 = vadd.f32 %v222, %v245
        %v250 = vadd.f32 %v223, %v241
        %v251 = vadd.f32 %v224, %v245
        %v252 = vadd.f32 %v225, %v241
        %v253 = vadd.f32 %v226, %v245
        %v254 = vadd.f32 %v227, %v241
        %v255 = vadd.f32 %v228, %v245
        %v256 = vadd.f32 %v229, %v241
        %v257 = vadd.f32 %v230, %v245
        %v258 = vadd.f32 %v231, %v241
        %v259 = vadd.f32 %v232, %v245
        %v260 = vadd.f32 %v233, %v241
        %v261 = vadd.f32 %v234, %v245
        %v262 = vadd.f32 %v235, %v241
        %v263 = vadd.f32 %v236, %v245
        %264 = vst [vmem:[%s189] sm:$0xff] %v248
        %265 = vst [vmem:[%s189 + $0x8] sm:$0xff] %v249
        %266 = vst [vmem:[%s189 + $0x10] sm:$0xff] %v250
        %267 = vst [vmem:[%s189 + $0x18] sm:$0xff] %v251
        %268 = vst [vmem:[%s189 + $0x20] sm:$0xff] %v252
        %269 = vst [vmem:[%s189 + $0x28] sm:$0xff] %v253
        %270 = vst [vmem:[%s189 + $0x30] sm:$0xff] %v254
        %271 = vst [vmem:[%s189 + $0x38] sm:$0xff] %v255
        %272 = vst [vmem:[%s189 + $0x40] sm:$0xff] %v256
        %273 = vst [vmem:[%s189 + $0x48] sm:$0xff] %v257
        %274 = vst [vmem:[%s189 + $0x50] sm:$0xff] %v258
        %275 = vst [vmem:[%s189 + $0x58] sm:$0xff] %v259
        %276 = vst [vmem:[%s189 + $0x60] sm:$0xff] %v260
        %277 = vst [vmem:[%s189 + $0x68] sm:$0xff] %v261
        %278 = vst [vmem:[%s189 + $0x70] sm:$0xff] %v262
        %279 = vst [vmem:[%s189 + $0x78] sm:$0xff] %v263
        %s280 = sand.u32 %s96, 1
        %s281 = scalar_lea.sflag [#allocation4], %s280
        %s282 = sand.u32 %s96, 1
        %s283 = smul.addr %s282, 128
        %s284 = scalar_lea.vmem [#allocation5], %s283
        // Predicated region
        $region37: #{_lambda_.1} parent=31 // pred_check
          %p285 = pneg %p106
        $region38: #{_lambda_.1} parent=31 // pred_check_branch
          %287 = sbr.rel (%p285) target = $region40
        $region39: #{_lambda_.1} parent=31 // pred_region
          %s288 = smul.u32 8, %s20
          %s290 = ssub.s32 2048, 2048
          %291 = vsyncadd %s281, %s290
          %s292 = smul.addr %s288, 2
          %s293 = smul.addr %s292, 128
          %s294 = scalar_lea.hbm %s3, %s293
          %s295 = sshll.u32 %s284, 4
          %s296 = int_to_ptr.vmem [resolvable:$true] %s295
          %301 = dma.vmem_to_hbm [thread:$0]  %s296, 2048, %s294, %s281, 256, 256, 16
        $region40: #{_lambda_.1} parent=31 // pred_fallthru
          _
      $region32: #{_lambda_.1} parent=5 // pred_fallthru
        _
      %p302 = scmp.le.s32.totalorder 2, %s15
      // Predicated region
      $region41: #{_lambda_.1} parent=5 // pred_check
        %p303 = pneg %p302
      $region42: #{_lambda_.1} parent=5 // pred_check_branch
        %305 = sbr.rel (%p303) target = $region44
      $region43: #{_lambda_.1} parent=5 // pred_region
        %s306 = ssub.s32 %s15, 2
        // Predicated region
        $region45: #{_lambda_.1} parent=43 // pred_check
          %p307 = pneg %p112
        $region46: #{_lambda_.1} parent=43 // pred_check_branch
          %309 = sbr.rel (%p307) target = $region48
        $region47: #{_lambda_.1} parent=43 // pred_region
          %s310 = sand.u32 %s97, 1
          %s311 = scalar_lea.sflag [#allocation4], %s310
          %s312 = sand.u32 %s97, 1
          %s313 = smul.addr %s312, 128
          %s314 = scalar_lea.vmem [#allocation5], %s313
          %315 = dma.done %s311, 2048
        $region48: #{_lambda_.1} parent=43 // pred_fallthru
          _
      $region44: #{_lambda_.1} parent=5 // pred_fallthru
        _
    $region6: #{_lambda_.1} parent=1 // loop_footer
      %s19 = sadd.s32 1, %s15
    $region7: #{_lambda_.1} parent=1 // loop_footer_branch
      %14 = sbr.rel target = $region3
    $region8: #{_lambda_.1} parent=1 // loop_exit
      _
    %316 = vsyncpa [#allocation3], 1
    %s317 = scalar_lea.sflag [#allocation3], 1
    %318 = vsyncpa %s317, 1
    %319 = vsyncpa [#allocation4], 1
    %s320 = scalar_lea.sflag [#allocation4], 1
    %321 = vsyncpa %s320, 1

</llo_original>
